<compile_context>
chip_gen: v5e
topology: v5e:2x2
jax: 0.10.0
libtpu: 0.0.40
codegen_flags: <defaults>
</compile_context>

<pallas_src>
import jax
import jax.numpy as jnp
from jax.experimental import pallas as pl
from jax.experimental.pallas import tpu as pltpu


# ----------------------------------------------------------------------------
# Kernels
# ----------------------------------------------------------------------------

def _se_single_step_kernel(x_ref, wd_ref, wu_ref, o_ref):
    # One grid step per N-block: the whole spatial extent is resident, so the
    # reduce + transpose happen exactly once per block (no accumulator needed).
    pooled = jnp.sum(x_ref[...].astype(jnp.float32), axis=-1)          # (n_blk, C)
    hidden = jnp.maximum(
        jnp.dot(pooled, wd_ref[...], preferred_element_type=jnp.float32), 0.0)
    gate = jnp.dot(hidden, wu_ref[...], preferred_element_type=jnp.float32)
    o_ref[...] = jax.nn.sigmoid(gate)[:, None, :].astype(o_ref.dtype)


def _make_multi_step_kernel(hw_total, hw_tile, hw_steps):
    """Streaming kernel: grid = (N-blocks 'parallel', HW-steps 'arbitrary')."""
    n_chunks = hw_tile // 128
    ragged = (hw_total % hw_tile) != 0
    last = hw_steps - 1

    def kernel(x_ref, wd_ref, wu_ref, o_ref, acc_ref):
        # x_ref:   (n_blk, C, hw_tile)   native dtype
        # wd_ref:  (C, Cr) f32, 1/HW folded in;  wu_ref: (Cr, C) f32
        # o_ref:   (n_blk, 1, C)  gate, x dtype (written only on last HW step)
        # acc_ref: (n_blk, C, 128) f32 lane-aligned partial sums
        h = pl.program_id(1)

        @pl.when(h == 0)
        def _init():
            acc_ref[...] = jnp.zeros_like(acc_ref)

        def _accumulate(boundary_step):
            # 128-lane-wide strided adds into the partial-sum accumulator:
            # cast + (optional select) + add are all VPU work; the cross-lane
            # XLU reduce is deferred to the finalize.
            for c in range(n_chunks):
                start = c * 128
                n_valid = 128
                if boundary_step:
                    g0 = last * hw_tile + start          # static global lane offset
                    if g0 >= hw_total:
                        break                            # chunk fully out of bounds
                    n_valid = hw_total - g0
                chunk = x_ref[:, :, start:start + 128].astype(jnp.float32)
                if boundary_step and n_valid < 128:
                    lane = jax.lax.broadcasted_iota(jnp.int32, (1, 1, 128), 2)
                    chunk = jnp.where(lane < n_valid, chunk, 0.0)
                acc_ref[...] += chunk

        if ragged:
            @pl.when(h < last)
            def _body():
                _accumulate(False)

            @pl.when(h == last)
            def _tail():
                _accumulate(True)
        else:
            _accumulate(False)

        @pl.when(h == last)
        def _finalize():
            pooled = jnp.sum(acc_ref[...], axis=-1)                    # (n_blk, C) f32
            hidden = jnp.maximum(
                jnp.dot(pooled, wd_ref[...], preferred_element_type=jnp.float32), 0.0)
            gate = jnp.dot(hidden, wu_ref[...], preferred_element_type=jnp.float32)
            o_ref[...] = jax.nn.sigmoid(gate)[:, None, :].astype(o_ref.dtype)

    return kernel


# ----------------------------------------------------------------------------
# Tiling / budget selection
# ----------------------------------------------------------------------------

def _vmem_capacity_bytes():
    try:
        info = pltpu.get_tpu_info()
        for attr in ("vmem_capacity_bytes", "vmem_size_bytes", "vmem_bytes"):
            cap = getattr(info, attr, None)
            if cap:
                return int(cap)
    except Exception:
        pass
    return 64 * 1024 * 1024  # conservative fallback (v7x per-core VMEM)


def _choose_tiling(N, C, HW, itemsize, budget, max_hw_tile=None):
    """Return (n_blk, hw_tile). hw_tile == HW means single-HW-step path."""

    def fits(n_blk, hw_tile, single):
        x_bytes = 2 * n_blk * C * hw_tile * itemsize        # double-buffered x block
        if single and itemsize < 4:
            x_bytes += n_blk * C * hw_tile * 4               # possible f32 cast temp
        scratch = n_blk * C * 128 * 4                        # partial-sum accumulator
        other = 2 * n_blk * C * itemsize + (1 << 20)         # out block + weights + slack
        return x_bytes + scratch + other <= budget

    divs = [d for d in range(min(N, 16), 0, -1) if N % d == 0]

    want_single = (max_hw_tile is None) or (max_hw_tile >= HW)
    if want_single or HW <= 128:
        for n_blk in divs:
            if fits(n_blk, HW, True):
                return n_blk, HW
        if HW <= 128:
            return 1, HW      # tiny spatial extent: never worth streaming

    # HW must be streamed: lane-dense tiles (multiples of 128), as wide as fits
    # (capped so the static in-kernel chunk loop stays small).
    lane_cap = HW if max_hw_tile is None else min(HW, max_hw_tile)
    lane_cap = max(128, min(8192, (lane_cap // 128) * 128))
    hw_tile = 128
    for chunks in range(lane_cap // 128, 0, -1):
        if fits(1, chunks * 128, False):
            hw_tile = chunks * 128
            break
    n_blk = next((d for d in divs if fits(d, hw_tile, False)), 1)
    return n_blk, hw_tile


# ----------------------------------------------------------------------------
# Wrapper
# ----------------------------------------------------------------------------

def se_layer(x_nchw, w_down, w_up, *, max_hw_tile=None):
    """SELayer forward (returns the sigmoid gate, matching the PyTorch module).

    x_nchw: (N, C, H, W); w_down: (C//r, C, 1, 1); w_up: (C, C//r, 1, 1).
    Returns the gate of shape (N, C, 1, 1) in x's dtype.
    `max_hw_tile` is a testing hook to force the streaming (multi-step) path.
    """
    N, C, H, W = x_nchw.shape
    Cr = w_down.shape[0]
    HW = H * W

    # x travels in its native dtype, no host-side padding.
    x3 = x_nchw.reshape(N, C, HW)
    itemsize = x3.dtype.itemsize

    vmem_cap = _vmem_capacity_bytes()
    budget = int(vmem_cap * 0.4)                     # per-step block budget (with headroom)
    vmem_limit = int(min(vmem_cap * 0.75, max(32 * 1024 * 1024, budget * 2)))

    n_blk, hw_tile = _choose_tiling(N, C, HW, itemsize, budget, max_hw_tile)
    hw_steps = pl.cdiv(HW, hw_tile)

    # Fold the 1/HW pooling scale into the down-projection weight (done once,
    # outside the hot path).
    wd_t = (w_down.reshape(Cr, C).astype(jnp.float32) * (1.0 / HW)).T   # (C, Cr)
    wu_t = w_up.reshape(C, Cr).astype(jnp.float32).T                    # (Cr, C)

    cost = pl.CostEstimate(
        flops=2 * N * C * HW + 2 * N * C * Cr + 2 * N * Cr * C,
        transcendentals=N * C,
        bytes_accessed=int(x3.size) * itemsize + (wd_t.size + wu_t.size) * 4
        + N * C * itemsize,
    )

    if hw_steps == 1:
        out = pl.pallas_call(
            _se_single_step_kernel,
            out_shape=jax.ShapeDtypeStruct((N, 1, C), x_nchw.dtype),
            grid_spec=pltpu.PrefetchScalarGridSpec(
                num_scalar_prefetch=0,
                grid=(N // n_blk,),
                in_specs=[
                    pl.BlockSpec((n_blk, C, HW), lambda n: (n, 0, 0)),
                    pl.BlockSpec((C, Cr), lambda n: (0, 0)),
                    pl.BlockSpec((Cr, C), lambda n: (0, 0)),
                ],
                out_specs=pl.BlockSpec((n_blk, 1, C), lambda n: (n, 0, 0)),
            ),
            compiler_params=pltpu.CompilerParams(
                dimension_semantics=("parallel",),
                vmem_limit_bytes=vmem_limit,
            ),
            cost_estimate=cost,
        )(x3, wd_t, wu_t)
    else:
        kernel = _make_multi_step_kernel(HW, hw_tile, hw_steps)
        out = pl.pallas_call(
            kernel,
            out_shape=jax.ShapeDtypeStruct((N, 1, C), x_nchw.dtype),
            grid_spec=pltpu.PrefetchScalarGridSpec(
                num_scalar_prefetch=0,
                grid=(N // n_blk, hw_steps),
                in_specs=[
                    pl.BlockSpec((n_blk, C, hw_tile), lambda n, h: (n, 0, h)),
                    pl.BlockSpec((C, Cr), lambda n, h: (0, 0)),
                    pl.BlockSpec((Cr, C), lambda n, h: (0, 0)),
                ],
                # Same output block index across the HW axis -> stays resident;
                # written only on the last HW step.
                out_specs=pl.BlockSpec((n_blk, 1, C), lambda n, h: (n, 0, 0)),
                scratch_shapes=[pltpu.VMEM((n_blk, C, 128), jnp.float32)],
            ),
            compiler_params=pltpu.CompilerParams(
                dimension_semantics=("parallel", "arbitrary"),
                vmem_limit_bytes=vmem_limit,
            ),
            cost_estimate=cost,
        )(x3, wd_t, wu_t)

    # NOTE: the module returns only the gate; if a caller applies x * gate,
    # that apply could be fused here to avoid a second pass over x.
    return out.reshape(N, C, 1, 1)


# ----------------------------------------------------------------------------
# Reference + self-test
# ----------------------------------------------------------------------------

def _reference(x_nchw, w_down, w_up):
    N, C, H, W = x_nchw.shape
    Cr = w_down.shape[0]
    pooled = jnp.mean(x_nchw.astype(jnp.float32), axis=(2, 3))      # (N, C)
    h = jnp.maximum(pooled @ w_down.reshape(Cr, C).T, 0.0)          # (N, C//r)
    g = jax.nn.sigmoid(h @ w_up.reshape(C, Cr).T)                   # (N, C)
    return g.reshape(N, C, 1, 1)


if __name__ == "__main__":
    # module config: planes=64, reduction=16 -> bottleneck 4 channels
    N, C, H, W = 2, 64, 16, 16
    reduction = 16
    Cr = C // reduction

    key = jax.random.PRNGKey(0)
    kx, kd, ku, kx2 = jax.random.split(key, 4)

    x = jax.random.normal(kx, (N, C, H, W), dtype=jnp.float32)
    w_down = jax.random.normal(kd, (Cr, C, 1, 1), dtype=jnp.float32) * (2.0 / C) ** 0.5
    w_up = jax.random.normal(ku, (C, Cr, 1, 1), dtype=jnp.float32) * (2.0 / Cr) ** 0.5

    # 1) single-HW-step (full-extent) path
    out = jax.block_until_ready(se_layer(x, w_down, w_up))
    ref = jax.block_until_ready(_reference(x, w_down, w_up))
    assert out.shape == (N, C, 1, 1), out.shape
    assert out.dtype == x.dtype
    assert jnp.allclose(out, ref, atol=2e-5, rtol=1e-4), "single-step mismatch"

    # 2) streaming multi-step path with a ragged final tile (HW=324 = 2*128 + 68)
    x2 = jax.random.normal(kx2, (N, C, 18, 18), dtype=jnp.float32)
    out2 = jax.block_until_ready(se_layer(x2, w_down, w_up, max_hw_tile=128))
    ref2 = jax.block_until_ready(_reference(x2, w_down, w_up))
    assert out2.shape == (N, C, 1, 1), out2.shape
    assert jnp.allclose(out2, ref2, atol=2e-5, rtol=1e-4), "multi-step mismatch"

    print("KERNEL_OK")
</pallas_src>

<mosaic_0001>
module attributes {stable_mosaic.version = 11 : i64} {
  func.func @_se_single_step_kernel(%arg0: i32, %arg1: memref<2x64x256xf32, #tpu.memory_space<vmem>>, %arg2: memref<64x4xf32, #tpu.memory_space<vmem>>, %arg3: memref<4x64xf32, #tpu.memory_space<vmem>>, %arg4: memref<2x1x64xf32, #tpu.memory_space<vmem>>) attributes {dimension_semantics = [#tpu.dimension_semantics<parallel>], iteration_bounds = array<i64: 1>, scalar_prefetch = 0 : i64, scratch_operands = 0 : i64, tpu.core_type = #tpu.core_type<tc>, window_params = [{transform_indices = @transform_0, window_bounds = array<i64: 2, 64, 256>}, {pipeline_mode = #tpu.pipeline_mode<synchronous>, transform_indices = @transform_1, window_bounds = array<i64: 64, 4>}, {pipeline_mode = #tpu.pipeline_mode<synchronous>, transform_indices = @transform_2, window_bounds = array<i64: 4, 64>}, {transform_indices = @transform_3, window_bounds = array<i64: 2, 1, 64>}]} {
    %c0 = arith.constant 0 : index
    %c0_0 = arith.constant 0 : index
    %c0_1 = arith.constant 0 : index
    %0 = vector.load %arg1[%c0, %c0_0, %c0_1] : memref<2x64x256xf32, #tpu.memory_space<vmem>>, vector<2x64x256xf32>
    %cst = arith.constant dense<0.000000e+00> : vector<2x64xf32>
    %1 = vector.multi_reduction <add>, %0, %cst [2] : vector<2x64x256xf32> to vector<2x64xf32>
    %c0_2 = arith.constant 0 : index
    %c0_3 = arith.constant 0 : index
    %2 = vector.load %arg2[%c0_2, %c0_3] : memref<64x4xf32, #tpu.memory_space<vmem>>, vector<64x4xf32>
    %cst_4 = arith.constant dense<0.000000e+00> : vector<2x4xf32>
    %3 = tpu.matmul %1, %2, %cst_4 {dimension_numbers = #tpu.dot_dimension_numbers<[1], [0], [0], [1], [0, 0, 1, 1], [], []>} : vector<2x64xf32>, vector<64x4xf32>, vector<2x4xf32> -> vector<2x4xf32>
    %cst_5 = arith.constant 0.000000e+00 : f32
    %4 = vector.broadcast %cst_5 : f32 to vector<2x4xf32>
    %5 = arith.maximumf %3, %4 : vector<2x4xf32>
    %c0_6 = arith.constant 0 : index
    %c0_7 = arith.constant 0 : index
    %6 = vector.load %arg3[%c0_6, %c0_7] : memref<4x64xf32, #tpu.memory_space<vmem>>, vector<4x64xf32>
    %cst_8 = arith.constant dense<0.000000e+00> : vector<2x64xf32>
    %7 = tpu.matmul %5, %6, %cst_8 {dimension_numbers = #tpu.dot_dimension_numbers<[1], [0], [0], [1], [0, 0, 1, 1], [], []>} : vector<2x4xf32>, vector<4x64xf32>, vector<2x64xf32> -> vector<2x64xf32>
    %8 = arith.negf %7 : vector<2x64xf32>
    %9 = math.exp %8 : vector<2x64xf32>
    %cst_9 = arith.constant 1.000000e+00 : f32
    %10 = vector.broadcast %cst_9 : f32 to vector<2x64xf32>
    %11 = arith.addf %10, %9 : vector<2x64xf32>
    %12 = arith.divf %10, %11 : vector<2x64xf32>
    %13 = vector.shape_cast %12 : vector<2x64xf32> to vector<2x1x64xf32>
    %c0_10 = arith.constant 0 : index
    %c0_11 = arith.constant 0 : index
    %c0_12 = arith.constant 0 : index
    %14 = vector.load %arg4[%c0_10, %c0_11, %c0_12] : memref<2x1x64xf32, #tpu.memory_space<vmem>>, vector<2x1x64xf32>
    tpu.vector_store %arg4[%c0_10, %c0_11, %c0_12], %13 {strides = array<i32>} : memref<2x1x64xf32, #tpu.memory_space<vmem>>, vector<2x1x64xf32>,
    return
  }
  func.func @transform_0(%arg0: i32) -> (i32, i32, i32) {
    %c0_i32 = arith.constant 0 : i32
    %c0_i32_0 = arith.constant 0 : i32
    %c0_i32_1 = arith.constant 0 : i32
    return %arg0, %c0_i32, %c0_i32_0 : i32, i32, i32
  }
  func.func @transform_1(%arg0: i32) -> (i32, i32) {
    %c0_i32 = arith.constant 0 : i32
    %c0_i32_0 = arith.constant 0 : i32
    %c0_i32_1 = arith.constant 0 : i32
    return %c0_i32, %c0_i32_0 : i32, i32
  }
  func.func @transform_2(%arg0: i32) -> (i32, i32) {
    %c0_i32 = arith.constant 0 : i32
    %c0_i32_0 = arith.constant 0 : i32
    %c0_i32_1 = arith.constant 0 : i32
    return %c0_i32, %c0_i32_0 : i32, i32
  }
  func.func @transform_3(%arg0: i32) -> (i32, i32, i32) {
    %c0_i32 = arith.constant 0 : i32
    %c0_i32_0 = arith.constant 0 : i32
    %c0_i32_1 = arith.constant 0 : i32
    return %arg0, %c0_i32, %c0_i32_0 : i32, i32, i32
  }
}

</mosaic_0001>

<llo_original>
// kernel: tpu_custom_call.1
$region0: #{tpu_custom_call.1}
  #allocation0 [shape = 'u32[]', space=smem, size = 0x4, offset = 0x4, fixed_abs, tag = 'smem constant byte address 0x4 - core index']
  #allocation1 [shape = 'u32[72,128]{1,0:T(1,128)}', space=vmem, size = 0x9000, scoped, tag = 'internal scratch']
  %s0 = inlined_call_operand.hbm [shape: f32[2,64,256], index: 0, kind: input, shape index: {}]
  %s1 = inlined_call_operand.vmem [shape: f32[64,4], index: 1, kind: input, shape index: {}]
  %s2 = inlined_call_operand.vmem [shape: f32[4,64], index: 2, kind: input, shape index: {}]
  %s3 = inlined_call_operand.hbm [shape: f32[2,1,64], index: 3, kind: output, shape index: {}]
  %s4 = sld [smem:[#allocation0]]
  $region26: #{tpu_custom_call.1} parent=0
    _
  %s6 = ssub.s32 1, %s4
  %s7 = scalar_select 0, %s6, %s4
  $region1: #{tpu_custom_call.1} parent=0
    #allocation2 [shape = 'u8[131072]{0}', space=vmem, size = 0x20000, scoped, tag = 'input window, operand 0, single buffered']
    #allocation3 [shape = 's32[1]{0}', space=sflag, size = 0x4, scoped, tag = 'scoped memory for tpu_custom_call.1']
    #allocation4 [shape = 's32[1]{0}', space=sflag, size = 0x4, scoped, tag = 'scoped memory for tpu_custom_call.1']
    #allocation5 [shape = 'u8[1024]{0}', space=vmem, size = 0x400, scoped, tag = 'output window, operand 0, single buffered']
    %8 = vsyncpa [#allocation3], 0
    %9 = vsyncpa [#allocation4], 0
    // Predicated region
    $region2: #{tpu_custom_call.1} parent=1 // pred_check
      _
    $region3: #{tpu_custom_call.1} parent=1 // pred_check_branch
      %11 = sbr.rel (0) target = $region5
    $region4: #{tpu_custom_call.1} parent=1 // pred_region
      %13 = vsyncadd [#allocation3], 0
      %s14 = sshll.u32 %s0, 4
      %s15 = int_to_ptr.hbm [resolvable:$true] %s14
      %s16 = sshll.u32 [#allocation2], 4
      %s17 = int_to_ptr.vmem [resolvable:$true] %s16
      %22 = dma.hbm_to_vmem [thread:$0]  %s15, 4096, %s17, [#allocation3], 256, 256, 16
    $region5: #{tpu_custom_call.1} parent=1 // pred_fallthru
      _
    // Predicated region
    $region6: #{tpu_custom_call.1} parent=1 // pred_check
      _
    $region7: #{tpu_custom_call.1} parent=1 // pred_check_branch
      %24 = sbr.rel (0) target = $region9
    $region8: #{tpu_custom_call.1} parent=1 // pred_region
      _
    $region9: #{tpu_custom_call.1} parent=1 // pred_fallthru
      _
    // Predicated region
    $region10: #{tpu_custom_call.1} parent=1 // pred_check
      _
    $region11: #{tpu_custom_call.1} parent=1 // pred_check_branch
      %26 = sbr.rel (0) target = $region13
    $region12: #{tpu_custom_call.1} parent=1 // pred_region
      _
    $region13: #{tpu_custom_call.1} parent=1 // pred_fallthru
      _
    // Predicated region
    $region14: #{tpu_custom_call.1} parent=1 // pred_check
      _
    $region15: #{tpu_custom_call.1} parent=1 // pred_check_branch
      %28 = sbr.rel (0) target = $region17
    $region16: #{tpu_custom_call.1} parent=1 // pred_region
      %30 = dma.done [#allocation3], 4096
    $region17: #{tpu_custom_call.1} parent=1 // pred_fallthru
      _
    %v31 = vld [vmem:[#allocation2] sm:$0xff]
    %v32 = vld [vmem:[#allocation2 + $0x8] sm:$0xff]
    %v33 = vld [vmem:[#allocation2 + $0x10] sm:$0xff]
    %v34 = vld [vmem:[#allocation2 + $0x18] sm:$0xff]
    %v35 = vld [vmem:[#allocation2 + $0x20] sm:$0xff]
    %v36 = vld [vmem:[#allocation2 + $0x28] sm:$0xff]
    %v37 = vld [vmem:[#allocation2 + $0x30] sm:$0xff]
    %v38 = vld [vmem:[#allocation2 + $0x38] sm:$0xff]
    %v39 = vld [vmem:[#allocation2 + $0x40] sm:$0xff]
    %v40 = vld [vmem:[#allocation2 + $0x48] sm:$0xff]
    %v41 = vld [vmem:[#allocation2 + $0x50] sm:$0xff]
    %v42 = vld [vmem:[#allocation2 + $0x58] sm:$0xff]
    %v43 = vld [vmem:[#allocation2 + $0x60] sm:$0xff]
    %v44 = vld [vmem:[#allocation2 + $0x68] sm:$0xff]
    %v45 = vld [vmem:[#allocation2 + $0x70] sm:$0xff]
    %v46 = vld [vmem:[#allocation2 + $0x78] sm:$0xff]
    %v47 = vld [vmem:[#allocation2 + $0x80] sm:$0xff]
    %v48 = vld [vmem:[#allocation2 + $0x88] sm:$0xff]
    %v49 = vld [vmem:[#allocation2 + $0x90] sm:$0xff]
    %v50 = vld [vmem:[#allocation2 + $0x98] sm:$0xff]
    %v51 = vld [vmem:[#allocation2 + $0xa0] sm:$0xff]
    %v52 = vld [vmem:[#allocation2 + $0xa8] sm:$0xff]
    %v53 = vld [vmem:[#allocation2 + $0xb0] sm:$0xff]
    %v54 = vld [vmem:[#allocation2 + $0xb8] sm:$0xff]
    %v55 = vld [vmem:[#allocation2 + $0xc0] sm:$0xff]
    %v56 = vld [vmem:[#allocation2 + $0xc8] sm:$0xff]
    %v57 = vld [vmem:[#allocation2 + $0xd0] sm:$0xff]
    %v58 = vld [vmem:[#allocation2 + $0xd8] sm:$0xff]
    %v59 = vld [vmem:[#allocation2 + $0xe0] sm:$0xff]
    %v60 = vld [vmem:[#allocation2 + $0xe8] sm:$0xff]
    %v61 = vld [vmem:[#allocation2 + $0xf0] sm:$0xff]
    %v62 = vld [vmem:[#allocation2 + $0xf8] sm:$0xff]
    %v63 = vadd.f32 %v31, %v32
    %64 = vadd.xlane.f32.xlu0 %v63
    %v65 = vpop.xlane.xlu0 %64
    %v66 = vadd.f32 %v33, %v34
    %67 = vadd.xlane.f32.xlu0 %v66
    %v68 = vpop.xlane.xlu0 %67
    %v69 = vadd.f32 %v35, %v36
    %70 = vadd.xlane.f32.xlu0 %v69
    %v71 = vpop.xlane.xlu0 %70
    %v72 = vadd.f32 %v37, %v38
    %73 = vadd.xlane.f32.xlu0 %v72
    %v74 = vpop.xlane.xlu0 %73
    %v75 = vadd.f32 %v39, %v40
    %76 = vadd.xlane.f32.xlu0 %v75
    %v77 = vpop.xlane.xlu0 %76
    %v78 = vadd.f32 %v41, %v42
    %79 = vadd.xlane.f32.xlu0 %v78
    %v80 = vpop.xlane.xlu0 %79
    %v81 = vadd.f32 %v43, %v44
    %82 = vadd.xlane.f32.xlu0 %v81
    %v83 = vpop.xlane.xlu0 %82
    %v84 = vadd.f32 %v45, %v46
    %85 = vadd.xlane.f32.xlu0 %v84
    %v86 = vpop.xlane.xlu0 %85
    %v87 = vadd.f32 %v47, %v48
    %88 = vadd.xlane.f32.xlu0 %v87
    %v89 = vpop.xlane.xlu0 %88
    %v90 = vadd.f32 %v49, %v50
    %91 = vadd.xlane.f32.xlu0 %v90
    %v92 = vpop.xlane.xlu0 %91
    %v93 = vadd.f32 %v51, %v52
    %94 = vadd.xlane.f32.xlu0 %v93
    %v95 = vpop.xlane.xlu0 %94
    %v96 = vadd.f32 %v53, %v54
    %97 = vadd.xlane.f32.xlu0 %v96
    %v98 = vpop.xlane.xlu0 %97
    %v99 = vadd.f32 %v55, %v56
    %100 = vadd.xlane.f32.xlu0 %v99
    %v101 = vpop.xlane.xlu0 %100
    %v102 = vadd.f32 %v57, %v58
    %103 = vadd.xlane.f32.xlu0 %v102
    %v104 = vpop.xlane.xlu0 %103
    %v105 = vadd.f32 %v59, %v60
    %106 = vadd.xlane.f32.xlu0 %v105
    %v107 = vpop.xlane.xlu0 %106
    %v108 = vadd.f32 %v61, %v62
    %109 = vadd.xlane.f32.xlu0 %v108
    %v110 = vpop.xlane.xlu0 %109
    %v111 = vld [vmem:[%s1] sm:$0xff]
    %v112 = vld [vmem:[%s1 + $0x8] sm:$0xff]
    %v113 = vld [vmem:[%s1 + $0x10] sm:$0xff]
    %v114 = vld [vmem:[%s1 + $0x18] sm:$0xff]
    %v115 = vld [vmem:[%s1 + $0x20] sm:$0xff]
    %v116 = vld [vmem:[%s1 + $0x28] sm:$0xff]
    %v117 = vld [vmem:[%s1 + $0x30] sm:$0xff]
    %v118 = vld [vmem:[%s1 + $0x38] sm:$0xff]
    %v135 = vlaneseq
    %v136 = vand.u32 %v135, 127
    %v137 = vperm.slane %v65, %v136
    %v138 = vadd.s32 %v136, 4294967288
    %v139 = vperm.slane %v68, %v138
    %vm140 = vcmask 130112
    %v141 = vsel %vm140, %v139, %v137
    %v142 = vadd.s32 %v136, 4294967280
    %v143 = vperm.slane %v71, %v142
    %vm144 = vcmask 195712
    %v145 = vsel %vm144, %v143, %v141
    %v146 = vadd.s32 %v136, 4294967272
    %v147 = vperm.slane %v74, %v146
    %vm148 = vcmask 261312
    %v149 = vsel %vm148, %v147, %v145
    %v150 = vadd.s32 %v136, 4294967264
    %v151 = vperm.slane %v77, %v150
    %vm152 = vcmask 326912
    %v153 = vsel %vm152, %v151, %v149
    %v154 = vadd.s32 %v136, 4294967256
    %v155 = vperm.slane %v80, %v154
    %vm156 = vcmask 392512
    %v157 = vsel %vm156, %v155, %v153
    %v158 = vadd.s32 %v136, 4294967248
    %v159 = vperm.slane %v83, %v158
    %vm160 = vcmask 458112
    %v161 = vsel %vm160, %v159, %v157
    %v162 = vadd.s32 %v136, 4294967240
    %v163 = vperm.slane %v86, %v162
    %vm164 = vcmask 523712
    %v165 = vsel %vm164, %v163, %v161
    %v166 = vperm.slane %v89, %v136
    %v167 = vperm.slane %v92, %v138
    %v168 = vsel %vm140, %v167, %v166
    %v169 = vperm.slane %v95, %v142
    %v170 = vsel %vm144, %v169, %v168
    %v171 = vperm.slane %v98, %v146
    %v172 = vsel %vm148, %v171, %v170
    %v173 = vperm.slane %v101, %v150
    %v174 = vsel %vm152, %v173, %v172
    %v175 = vperm.slane %v104, %v154
    %v176 = vsel %vm156, %v175, %v174
    %v177 = vperm.slane %v107, %v158
    %v178 = vsel %vm160, %v177, %v176
    %v179 = vperm.slane %v110, %v162
    %v180 = vsel %vm164, %v179, %v178
    %vm181 = vcmask 1041409
    %v182 = vsel %vm181, %v180, %v165
    %vm183 = vcmask 523264
    %v184 = vsel %vm183, %v182, 0
    %186 = vmatpush.msra.mxu0 0.0
    %187 = vmatpush.msra.mxu0 0.0
    %188 = vmatpush.msra.mxu0 0.0
    %189 = vmatpush.msra.mxu0 0.0
    %190 = vmatpush.msra.mxu0 0.0
    %191 = vmatpush.msra.mxu0 0.0
    %192 = vmatpush.msra.mxu0 0.0
    %193 = vmatpush.msra.mxu0 0.0
    %194 = vmatpush.msra.mxu0 %v118
    %195 = vmatpush.msra.mxu0 %v117
    %196 = vmatpush.msra.mxu0 %v116
    %197 = vmatpush.msra.mxu0 %v115
    %198 = vmatpush.msra.mxu0 %v114
    %199 = vmatpush.msra.mxu0 %v113
    %200 = vmatpush.msra.mxu0 %v112
    %201 = vmatpush.msra.mxu0 %v111
    %202 = vmatmul.f32.gmra.mxu0 %v184
    %v203 = vpop.f32.mrf.mxu0
    %v204 = vadd.f32 0.0, %v203
    %205 = vdwg.mxu0
    %v206 = vmax.f32 %v204, 0.0
    %v207 = vld [vmem:[%s2] sm:$0xf]
    %vm208 = vcmask 31744
    %v210 = vsel %vm208, %v206, 0
    %vm212 = vcmask 1043456
    %v214 = vsel %vm212, %v207, 0
    %216 = vmatpush.msra.mxu0 0.0
    %217 = vmatpush.msra.mxu0 0.0
    %218 = vmatpush.msra.mxu0 0.0
    %219 = vmatpush.msra.mxu0 0.0
    %220 = vmatpush.msra.mxu0 0.0
    %221 = vmatpush.msra.mxu0 0.0
    %222 = vmatpush.msra.mxu0 0.0
    %223 = vmatpush.msra.mxu0 0.0
    %224 = vmatpush.msra.mxu0 0.0
    %225 = vmatpush.msra.mxu0 0.0
    %226 = vmatpush.msra.mxu0 0.0
    %227 = vmatpush.msra.mxu0 0.0
    %228 = vmatpush.msra.mxu0 0.0
    %229 = vmatpush.msra.mxu0 0.0
    %230 = vmatpush.msra.mxu0 0.0
    %231 = vmatpush.msra.mxu0 %v214
    %232 = vmatmul.f32.gmra.mxu0 %v210
    %v233 = vpop.f32.mrf.mxu0
    %v234 = vadd.f32 0.0, %v233
    %235 = vdwg.mxu0
    %v236 = vxor.u32 %v234, 2147483648
    %v237 = vmul.f32 %v236, 1.442695
    %v238 = vpow.pop %v237
    %v239 = vadd.f32 %v238, 1.0
    %v240 = vrcp.pop %v239
    %v241 = vmul.f32 %v239, %v240
    %v242 = vsub.f32 1.0, %v241
    %v243 = vmul.f32 %v240, %v242
    %v244 = vadd.f32 %v240, %v243
    %vm245 = vweird.f32 %v239
    %vm246 = vweird.f32 %v240
    %vm247 = vmor %vm245, %vm246
    %v248 = vsel %vm247, %v240, %v244
    %v249 = vand.u32 2147483647, %v239
    %vm250 = vcmp.eq.f32.partialorder %v249, 8.507059e+37
    %v251 = vand.u32 %v239, 2147483648
    %v252 = vor.u32 1.1754944e-38, %v251
    %v253 = vsel %vm250, %v252, %v248
    %v254 = vmul.f32 1.0, %v253
    %v256 = vrot.slane %v254, 1
    %vm258 = vcmask 516096
    %259 = vst.msk [vmem:[#allocation5] sm:$0x1] %vm258, %v254
    %260 = vst.msk [vmem:[#allocation5 + $0x1] sm:$0x1] %vm258, %v256
    // Predicated region
    $region18: #{tpu_custom_call.1} parent=1 // pred_check
      _
    $region19: #{tpu_custom_call.1} parent=1 // pred_check_branch
      %262 = sbr.rel (0) target = $region21
    $region20: #{tpu_custom_call.1} parent=1 // pred_region
      %264 = vsyncadd [#allocation4], 0
      %s265 = sshll.u32 [#allocation5], 4
      %s266 = int_to_ptr.vmem [resolvable:$true] %s265
      %s267 = sshll.u32 %s3, 4
      %s268 = int_to_ptr.hbm [resolvable:$true] %s267
      %273 = dma.vmem_to_hbm [thread:$0]  %s266, 32, %s268, [#allocation4], 16, 16, 1
    $region21: #{tpu_custom_call.1} parent=1 // pred_fallthru
      _
    // Predicated region
    $region22: #{tpu_custom_call.1} parent=1 // pred_check
      _
    $region23: #{tpu_custom_call.1} parent=1 // pred_check_branch
      %275 = sbr.rel (0) target = $region25
    $region24: #{tpu_custom_call.1} parent=1 // pred_region
      %277 = dma.done [#allocation4], 32
    $region25: #{tpu_custom_call.1} parent=1 // pred_fallthru
      _
    %278 = vsyncpa [#allocation3], 1
    %279 = vsyncpa [#allocation4], 1

</llo_original>
